<compile_context>
chip_gen: v7x
topology: tpu7x:2x2x1
jax: 0.10.0
libtpu: 0.0.40
codegen_flags: <defaults>
</compile_context>

<pallas_src>
import functools

import jax
import jax.numpy as jnp
from jax.experimental import pallas as pl
from jax.experimental.pallas import tpu as pltpu

# bf16 activations / conv weights halve HBM traffic of this memory-bound network
# (native MXU dtype on v6e/v7x).  All post-matmul math (BN affine, ReLU, residual,
# pool, FC) is f32, so v5e (no bf16 VALU/EUP) sees no bf16 elementwise ops.
ACT_DTYPE = jnp.bfloat16


# ---------------------------------------------------------------------------
# Pallas kernels
# ---------------------------------------------------------------------------
def _res_block_kernel(K, dilation, L, l_pad, r_pad, fuse_pool, *refs):
    """Fused Res_ConvBlock for one batch element, channels-first (C, L) layout."""
    if fuse_pool:
        (x_ref, w1_ref, s1_ref, b1_ref, w2_ref, s2_ref, b2_ref,
         fcw_ref, fcb_ref, out_ref, pooled_ref) = refs
    else:
        (x_ref, w1_ref, s1_ref, b1_ref, w2_ref, s2_ref, b2_ref, y_ref) = refs

    def reflect_pad(v):
        # PyTorch ReflectionPad1d along the time (lane) axis, built in VMEM so no
        # padded copy of the activation ever round-trips through HBM.
        pieces = [v[:, l_pad - i:l_pad - i + 1] for i in range(l_pad)]
        pieces.append(v)
        pieces += [v[:, L - 2 - i:L - 1 - i] for i in range(r_pad)]
        return jnp.concatenate(pieces, axis=1) if (l_pad or r_pad) else v

    def conv_bn_relu(v, w_ref, scale_ref, shift_ref):
        vp = reflect_pad(v)                                   # (Cin, L + pad)
        acc = None
        for k in range(K):  # static unroll: each tap is a lane-dense MXU matmul
            # TODO(synk): a (K*Cin, L) im2col would collapse this into one matmul,
            # but building it needs sublane-misaligned repacking that costs the
            # same XLU shifts it saves; kept as K taps (the net is HBM-bound).
            tap = jnp.dot(w_ref[k], vp[:, k * dilation:k * dilation + L],
                          preferred_element_type=jnp.float32)
            acc = tap if acc is None else acc + tap
        # conv bias + inference BatchNorm folded into per-channel scale / shift,
        # broadcast over lanes; ReLU.  All in f32.
        return jnp.maximum(acc * scale_ref[...] + shift_ref[...], 0.0)

    x = x_ref[0]                                              # (Cin, L) ACT_DTYPE
    # conv1 (Cin -> Cin, stride 1) with residual add (residual read from the same
    # resident input block; no separate DMA).
    h = conv_bn_relu(x, w1_ref, s1_ref, b1_ref) + x.astype(jnp.float32)
    # conv2 (Cin -> Cout); stride-1 result, caller subsamples for stride > 1.
    y = conv_bn_relu(h.astype(x.dtype), w2_ref, s2_ref, b2_ref)

    if fuse_pool:
        # AdaptiveAvgPool1d(1) + Linear fused into the last block: y never needs
        # to be written back to HBM at all.
        pooled = jnp.sum(y, axis=1, keepdims=True) * (1.0 / L)        # (Cout, 1)
        pooled_ref[0] = pooled.astype(pooled_ref.dtype)
        out_ref[0] = (jnp.dot(fcw_ref[...], pooled,
                              preferred_element_type=jnp.float32)
                      + fcb_ref[...]).astype(out_ref.dtype)
    else:
        y_ref[0] = y.astype(y_ref.dtype)


def _pool_fc_kernel(inv_len, x_ref, w_ref, b_ref, out_ref, pooled_ref):
    """Fallback global-average-pool + Linear (used only if the last block is strided)."""
    x = x_ref[0].astype(jnp.float32)                           # (C, L)
    pooled = jnp.sum(x, axis=1, keepdims=True) * inv_len       # (C, 1)
    pooled_ref[0] = pooled
    out_ref[0] = jnp.dot(w_ref[...], pooled,
                         preferred_element_type=jnp.float32) + b_ref[...]


# ---------------------------------------------------------------------------
# Wrappers around pallas_call
# ---------------------------------------------------------------------------
def res_conv_block(x, conv1, conv2, *, kernel_size, dilation, fc=None):
    """One fused Res_ConvBlock.

    x: (B, Cin, L) ACT_DTYPE, channels-first (time in lanes).
    conv1/conv2: (w (K, Cout, Cin), scale (Cout, 1), shift (Cout, 1)).
    fc: (fc_w (Z, C_last), fc_b (Z, 1)) -> additionally fuse pool + FC into this
        block (only used for the last block when its stride is 1).
    Returns the stride-1 (B, Cout, L) activation, or (output (B, Z), pooled (B, Cout)).
    """
    w1, s1, b1 = conv1
    w2, s2, b2 = conv2
    B, Cin, L = x.shape
    K = kernel_size
    Cout = w2.shape[1]
    pad = (K - 1) * dilation
    l_pad, r_pad = pad // 2, pad - pad // 2        # matches ReflectionPad1d (pad is even here)
    fuse_pool = fc is not None

    kernel = functools.partial(_res_block_kernel, K, dilation, L, l_pad, r_pad,
                               fuse_pool)

    in_specs = [
        pl.BlockSpec((1, Cin, L), lambda b: (b, 0, 0)),        # lane-dense activation
        pl.BlockSpec(w1.shape, lambda b: (0, 0, 0)),
        pl.BlockSpec(s1.shape, lambda b: (0, 0)),
        pl.BlockSpec(b1.shape, lambda b: (0, 0)),
        pl.BlockSpec(w2.shape, lambda b: (0, 0, 0)),
        pl.BlockSpec(s2.shape, lambda b: (0, 0)),
        pl.BlockSpec(b2.shape, lambda b: (0, 0)),
    ]
    args = [x, w1, s1, b1, w2, s2, b2]
    if fuse_pool:
        fc_w, fc_b = fc
        Z = fc_w.shape[0]
        in_specs += [pl.BlockSpec(fc_w.shape, lambda b: (0, 0)),
                     pl.BlockSpec(fc_b.shape, lambda b: (0, 0))]
        args += [fc_w, fc_b]
        out_shapes = (jax.ShapeDtypeStruct((B, Z, 1), jnp.float32),
                      jax.ShapeDtypeStruct((B, Cout, 1), jnp.float32))
        out_specs = (pl.BlockSpec((1, Z, 1), lambda b: (b, 0, 0)),
                     pl.BlockSpec((1, Cout, 1), lambda b: (b, 0, 0)))
    else:
        out_shapes = (jax.ShapeDtypeStruct((B, Cout, L), x.dtype),)
        out_specs = (pl.BlockSpec((1, Cout, L), lambda b: (b, 0, 0)),)

    itemsize = jnp.dtype(x.dtype).itemsize
    flops = 2 * B * L * K * Cin * (Cin + Cout)
    bytes_accessed = (itemsize * B * L * (Cin + Cout)
                      + itemsize * (w1.size + w2.size)
                      + 4 * (s1.size + b1.size + s2.size + b2.size))
    # Per-step VMEM: double-buffered in/out blocks + f32 temporaries.
    # TODO(synk): for long sequences tile the time axis (halo = 2*pad per side)
    # instead of whole-sequence blocks -- required for v7x's 64 MiB VMEM and for
    # pipelining / 2-TensorCore sharding beyond batch parallelism.
    per_step = (L + pad) * (Cin + Cout) * (2 * itemsize + 6 * 4)
    vmem_limit = int(min(64 * 2**20, max(16 * 2**20, 2 * per_step)))

    results = pl.pallas_call(
        kernel,
        out_shape=out_shapes,
        grid=(B,),
        in_specs=in_specs,
        out_specs=out_specs,
        compiler_params=pltpu.CompilerParams(
            dimension_semantics=("parallel",),
            vmem_limit_bytes=vmem_limit),
        cost_estimate=pl.CostEstimate(flops=int(flops), transcendentals=0,
                                      bytes_accessed=int(bytes_accessed)),
    )(*args)

    if fuse_pool:
        out, pooled = results
        return out[:, :, 0], pooled[:, :, 0]
    return results[0]


def pool_fc(x, fc_w, fc_b):
    """Fallback pool+FC over a (B, C, L) activation (last block strided)."""
    B, C, L = x.shape
    Z = fc_w.shape[0]
    out, pooled = pl.pallas_call(
        functools.partial(_pool_fc_kernel, 1.0 / L),
        out_shape=(jax.ShapeDtypeStruct((B, Z, 1), jnp.float32),
                   jax.ShapeDtypeStruct((B, C, 1), jnp.float32)),
        grid=(B,),
        in_specs=[pl.BlockSpec((1, C, L), lambda b: (b, 0, 0)),
                  pl.BlockSpec(fc_w.shape, lambda b: (0, 0)),
                  pl.BlockSpec(fc_b.shape, lambda b: (0, 0))],
        out_specs=(pl.BlockSpec((1, Z, 1), lambda b: (b, 0, 0)),
                   pl.BlockSpec((1, C, 1), lambda b: (b, 0, 0))),
        compiler_params=pltpu.CompilerParams(dimension_semantics=("parallel",)),
    )(x, fc_w, fc_b)
    return out[:, :, 0], pooled[:, :, 0]


# ---------------------------------------------------------------------------
# Parameter construction (deterministic, synthetic)
# ---------------------------------------------------------------------------
def init_params(key, config):
    channels = [2] + list(config["channels"])       # module does channels.insert(0, 2)
    blocks = []
    for i in range(len(config["kernels"])):
        K = config["kernels"][i]
        cin, cout = channels[i], channels[i + 1]
        layer = []
        for ci, co in ((cin, cin), (cin, cout)):    # conv1 (residual), conv2
            key, kw, kb, kg, kbe, krm, krv = jax.random.split(key, 7)
            w = jax.random.normal(kw, (K, co, ci), jnp.float32) / jnp.sqrt(float(K * ci))
            b = 0.1 * jax.random.normal(kb, (co,), jnp.float32)
            gamma = 1.0 + 0.1 * jax.random.normal(kg, (co,), jnp.float32)
            beta = 0.1 * jax.random.normal(kbe, (co,), jnp.float32)
            rmean = 0.1 * jax.random.normal(krm, (co,), jnp.float32)
            rvar = 1.0 + 0.1 * jax.random.uniform(krv, (co,), jnp.float32)
            s = gamma * jax.lax.rsqrt(rvar + 1e-5)
            scale = s.reshape(co, 1)                                   # f32
            shift = ((b - rmean) * s + beta).reshape(co, 1)            # f32
            layer.append((w.astype(ACT_DTYPE), scale, shift))
        blocks.append(layer)

    key, kfw, kfb = jax.random.split(key, 3)
    c_last, z = channels[-1], config["z_dim"]
    fc_w = jax.random.normal(kfw, (z, c_last), jnp.float32) / jnp.sqrt(float(c_last))
    fc_b = 0.1 * jax.random.normal(kfb, (z, 1), jnp.float32)
    return {"blocks": blocks, "fc_w": fc_w, "fc_b": fc_b}


# ---------------------------------------------------------------------------
# Full forward pass (matches Music_Effects_Encoder.forward)
# ---------------------------------------------------------------------------
def music_effects_encoder(x_ncl, params, config):
    """x_ncl: (N, 2, L) float, same NCL convention as the PyTorch module
    (already lane-dense: time in lanes)."""
    x = x_ncl.astype(ACT_DTYPE)
    n_blocks = len(config["kernels"])
    output = pooled = None
    for i in range(n_blocks):
        K = config["kernels"][i]
        d = config["dilation"][i]
        s = config["strides"][i]
        conv1, conv2 = params["blocks"][i]
        fuse_pool = (i == n_blocks - 1) and (s == 1)
        res = res_conv_block(
            x, conv1, conv2, kernel_size=K, dilation=d,
            fc=(params["fc_w"], params["fc_b"]) if fuse_pool else None)
        if fuse_pool:
            output, pooled = res
        else:
            # TODO(synk): fold stride>1 into the kernel; strided lane slices do
            # not lower robustly in Mosaic, so the stride-1 result is subsampled
            # here (numerically identical to the strided conv).
            x = res[:, :, ::s] if s > 1 else res
    if output is None:
        # Last block was strided: pool + FC over the (small) strided activation.
        output, pooled = pool_fc(x, params["fc_w"], params["fc_b"])
    return output, pooled


if __name__ == "__main__":
    config = {
        "channels": [8, 16, 32],
        "kernels": [5, 5, 3],
        "strides": [2, 2, 1],
        "dilation": [1, 2, 1],
        "norm": "batch",
        "activation": "relu",
        "z_dim": 16,
    }

    key = jax.random.PRNGKey(0)
    key, pkey, xkey = jax.random.split(key, 3)
    params = init_params(pkey, config)

    # (N, C=2, L) stereo audio input, like the PyTorch module expects
    x = jax.random.normal(xkey, (2, 2, 64), jnp.float32)

    output, glob_pooled = music_effects_encoder(x, params, config)
    (output, glob_pooled) = jax.block_until_ready((output, glob_pooled))

    assert output.shape == (2, config["z_dim"])
    assert glob_pooled.shape == (2, config["channels"][-1])
    assert jnp.all(jnp.isfinite(output)) and jnp.all(jnp.isfinite(glob_pooled))
    print("KERNEL_OK")
</pallas_src>

<mosaic_0001>
module attributes {stable_mosaic.version = 11 : i64} {
  func.func @_res_block_kernel(%arg0: i32, %arg1: memref<1x2x64xbf16, #tpu.memory_space<vmem>>, %arg2: memref<5x2x2xbf16, #tpu.memory_space<vmem>>, %arg3: memref<2x1xf32, #tpu.memory_space<vmem>>, %arg4: memref<2x1xf32, #tpu.memory_space<vmem>>, %arg5: memref<5x8x2xbf16, #tpu.memory_space<vmem>>, %arg6: memref<8x1xf32, #tpu.memory_space<vmem>>, %arg7: memref<8x1xf32, #tpu.memory_space<vmem>>, %arg8: memref<1x8x64xbf16, #tpu.memory_space<vmem>>) attributes {dimension_semantics = [#tpu.dimension_semantics<parallel>], iteration_bounds = array<i64: 2>, scalar_prefetch = 0 : i64, scratch_operands = 0 : i64, tpu.core_type = #tpu.core_type<tc>, window_params = [{transform_indices = @transform_0, window_bounds = array<i64: 1, 2, 64>}, {pipeline_mode = #tpu.pipeline_mode<synchronous>, transform_indices = @transform_1, window_bounds = array<i64: 5, 2, 2>}, {pipeline_mode = #tpu.pipeline_mode<synchronous>, transform_indices = @transform_2, window_bounds = array<i64: 2, 1>}, {pipeline_mode = #tpu.pipeline_mode<synchronous>, transform_indices = @transform_3, window_bounds = array<i64: 2, 1>}, {pipeline_mode = #tpu.pipeline_mode<synchronous>, transform_indices = @transform_4, window_bounds = array<i64: 5, 8, 2>}, {pipeline_mode = #tpu.pipeline_mode<synchronous>, transform_indices = @transform_5, window_bounds = array<i64: 8, 1>}, {pipeline_mode = #tpu.pipeline_mode<synchronous>, transform_indices = @transform_6, window_bounds = array<i64: 8, 1>}, {transform_indices = @transform_7, window_bounds = array<i64: 1, 8, 64>}]} {
    %c0 = arith.constant 0 : index
    %c0_0 = arith.constant 0 : index
    %c0_1 = arith.constant 0 : index
    %0 = vector.load %arg1[%c0, %c0_0, %c0_1] : memref<1x2x64xbf16, #tpu.memory_space<vmem>>, vector<1x2x64xbf16>
    %1 = vector.shape_cast %0 : vector<1x2x64xbf16> to vector<2x64xbf16>
    %2 = vector.extract_strided_slice %1 {offsets = [0, 2], sizes = [2, 1], strides = [1, 1]} : vector<2x64xbf16> to vector<2x1xbf16>
    %3 = vector.extract_strided_slice %1 {offsets = [0, 1], sizes = [2, 1], strides = [1, 1]} : vector<2x64xbf16> to vector<2x1xbf16>
    %4 = vector.extract_strided_slice %1 {offsets = [0, 62], sizes = [2, 1], strides = [1, 1]} : vector<2x64xbf16> to vector<2x1xbf16>
    %5 = vector.extract_strided_slice %1 {offsets = [0, 61], sizes = [2, 1], strides = [1, 1]} : vector<2x64xbf16> to vector<2x1xbf16>
    %6 = tpu.concatenate %2, %3, %1, %4, %5 in 1 : vector<2x1xbf16>, vector<2x1xbf16>, vector<2x64xbf16>, vector<2x1xbf16>, vector<2x1xbf16> -> vector<2x68xbf16>
    %c0_2 = arith.constant 0 : index
    %c0_3 = arith.constant 0 : index
    %c0_4 = arith.constant 0 : index
    %7 = vector.load %arg2[%c0_2, %c0_3, %c0_4] : memref<5x2x2xbf16, #tpu.memory_space<vmem>>, vector<1x2x2xbf16>
    %8 = vector.shape_cast %7 : vector<1x2x2xbf16> to vector<2x2xbf16>
    %9 = vector.extract_strided_slice %6 {offsets = [0, 0], sizes = [2, 64], strides = [1, 1]} : vector<2x68xbf16> to vector<2x64xbf16>
    %cst = arith.constant dense<0.000000e+00> : vector<2x64xf32>
    %10 = tpu.matmul %8, %9, %cst {dimension_numbers = #tpu.dot_dimension_numbers<[1], [0], [0], [1], [0, 0, 1, 1], [], []>} : vector<2x2xbf16>, vector<2x64xbf16>, vector<2x64xf32> -> vector<2x64xf32>
    %c1 = arith.constant 1 : index
    %c0_5 = arith.constant 0 : index
    %c0_6 = arith.constant 0 : index
    %11 = vector.load %arg2[%c1, %c0_5, %c0_6] : memref<5x2x2xbf16, #tpu.memory_space<vmem>>, vector<1x2x2xbf16>
    %12 = vector.shape_cast %11 : vector<1x2x2xbf16> to vector<2x2xbf16>
    %13 = vector.extract_strided_slice %6 {offsets = [0, 1], sizes = [2, 64], strides = [1, 1]} : vector<2x68xbf16> to vector<2x64xbf16>
    %cst_7 = arith.constant dense<0.000000e+00> : vector<2x64xf32>
    %14 = tpu.matmul %12, %13, %cst_7 {dimension_numbers = #tpu.dot_dimension_numbers<[1], [0], [0], [1], [0, 0, 1, 1], [], []>} : vector<2x2xbf16>, vector<2x64xbf16>, vector<2x64xf32> -> vector<2x64xf32>
    %15 = arith.addf %10, %14 : vector<2x64xf32>
    %c2 = arith.constant 2 : index
    %c0_8 = arith.constant 0 : index
    %c0_9 = arith.constant 0 : index
    %16 = vector.load %arg2[%c2, %c0_8, %c0_9] : memref<5x2x2xbf16, #tpu.memory_space<vmem>>, vector<1x2x2xbf16>
    %17 = vector.shape_cast %16 : vector<1x2x2xbf16> to vector<2x2xbf16>
    %18 = vector.extract_strided_slice %6 {offsets = [0, 2], sizes = [2, 64], strides = [1, 1]} : vector<2x68xbf16> to vector<2x64xbf16>
    %cst_10 = arith.constant dense<0.000000e+00> : vector<2x64xf32>
    %19 = tpu.matmul %17, %18, %cst_10 {dimension_numbers = #tpu.dot_dimension_numbers<[1], [0], [0], [1], [0, 0, 1, 1], [], []>} : vector<2x2xbf16>, vector<2x64xbf16>, vector<2x64xf32> -> vector<2x64xf32>
    %20 = arith.addf %15, %19 : vector<2x64xf32>
    %c3 = arith.constant 3 : index
    %c0_11 = arith.constant 0 : index
    %c0_12 = arith.constant 0 : index
    %21 = vector.load %arg2[%c3, %c0_11, %c0_12] : memref<5x2x2xbf16, #tpu.memory_space<vmem>>, vector<1x2x2xbf16>
    %22 = vector.shape_cast %21 : vector<1x2x2xbf16> to vector<2x2xbf16>
    %23 = vector.extract_strided_slice %6 {offsets = [0, 3], sizes = [2, 64], strides = [1, 1]} : vector<2x68xbf16> to vector<2x64xbf16>
    %cst_13 = arith.constant dense<0.000000e+00> : vector<2x64xf32>
    %24 = tpu.matmul %22, %23, %cst_13 {dimension_numbers = #tpu.dot_dimension_numbers<[1], [0], [0], [1], [0, 0, 1, 1], [], []>} : vector<2x2xbf16>, vector<2x64xbf16>, vector<2x64xf32> -> vector<2x64xf32>
    %25 = arith.addf %20, %24 : vector<2x64xf32>
    %c4 = arith.constant 4 : index
    %c0_14 = arith.constant 0 : index
    %c0_15 = arith.constant 0 : index
    %26 = vector.load %arg2[%c4, %c0_14, %c0_15] : memref<5x2x2xbf16, #tpu.memory_space<vmem>>, vector<1x2x2xbf16>
    %27 = vector.shape_cast %26 : vector<1x2x2xbf16> to vector<2x2xbf16>
    %28 = vector.extract_strided_slice %6 {offsets = [0, 4], sizes = [2, 64], strides = [1, 1]} : vector<2x68xbf16> to vector<2x64xbf16>
    %cst_16 = arith.constant dense<0.000000e+00> : vector<2x64xf32>
    %29 = tpu.matmul %27, %28, %cst_16 {dimension_numbers = #tpu.dot_dimension_numbers<[1], [0], [0], [1], [0, 0, 1, 1], [], []>} : vector<2x2xbf16>, vector<2x64xbf16>, vector<2x64xf32> -> vector<2x64xf32>
    %30 = arith.addf %25, %29 : vector<2x64xf32>
    %c0_17 = arith.constant 0 : index
    %c0_18 = arith.constant 0 : index
    %31 = vector.load %arg3[%c0_17, %c0_18] : memref<2x1xf32, #tpu.memory_space<vmem>>, vector<2x1xf32>
    %32 = vector.broadcast %31 : vector<2x1xf32> to vector<2x64xf32>
    %33 = arith.mulf %30, %32 : vector<2x64xf32>
    %c0_19 = arith.constant 0 : index
    %c0_20 = arith.constant 0 : index
    %34 = vector.load %arg4[%c0_19, %c0_20] : memref<2x1xf32, #tpu.memory_space<vmem>>, vector<2x1xf32>
    %35 = vector.broadcast %34 : vector<2x1xf32> to vector<2x64xf32>
    %36 = arith.addf %33, %35 : vector<2x64xf32>
    %cst_21 = arith.constant 0.000000e+00 : f32
    %37 = vector.broadcast %cst_21 : f32 to vector<2x64xf32>
    %38 = arith.maximumf %36, %37 : vector<2x64xf32>
    %39 = arith.extf %1 : vector<2x64xbf16> to vector<2x64xf32>
    %40 = arith.addf %38, %39 : vector<2x64xf32>
    %41 = arith.truncf %40 : vector<2x64xf32> to vector<2x64xbf16>
    %42 = vector.extract_strided_slice %41 {offsets = [0, 2], sizes = [2, 1], strides = [1, 1]} : vector<2x64xbf16> to vector<2x1xbf16>
    %43 = vector.extract_strided_slice %41 {offsets = [0, 1], sizes = [2, 1], strides = [1, 1]} : vector<2x64xbf16> to vector<2x1xbf16>
    %44 = vector.extract_strided_slice %41 {offsets = [0, 62], sizes = [2, 1], strides = [1, 1]} : vector<2x64xbf16> to vector<2x1xbf16>
    %45 = vector.extract_strided_slice %41 {offsets = [0, 61], sizes = [2, 1], strides = [1, 1]} : vector<2x64xbf16> to vector<2x1xbf16>
    %46 = tpu.concatenate %42, %43, %41, %44, %45 in 1 : vector<2x1xbf16>, vector<2x1xbf16>, vector<2x64xbf16>, vector<2x1xbf16>, vector<2x1xbf16> -> vector<2x68xbf16>
    %c0_22 = arith.constant 0 : index
    %c0_23 = arith.constant 0 : index
    %c0_24 = arith.constant 0 : index
    %47 = vector.load %arg5[%c0_22, %c0_23, %c0_24] : memref<5x8x2xbf16, #tpu.memory_space<vmem>>, vector<1x8x2xbf16>
    %48 = vector.shape_cast %47 : vector<1x8x2xbf16> to vector<8x2xbf16>
    %49 = vector.extract_strided_slice %46 {offsets = [0, 0], sizes = [2, 64], strides = [1, 1]} : vector<2x68xbf16> to vector<2x64xbf16>
    %cst_25 = arith.constant dense<0.000000e+00> : vector<8x64xf32>
    %50 = tpu.matmul %48, %49, %cst_25 {dimension_numbers = #tpu.dot_dimension_numbers<[1], [0], [0], [1], [0, 0, 1, 1], [], []>} : vector<8x2xbf16>, vector<2x64xbf16>, vector<8x64xf32> -> vector<8x64xf32>
    %c1_26 = arith.constant 1 : index
    %c0_27 = arith.constant 0 : index
    %c0_28 = arith.constant 0 : index
    %51 = vector.load %arg5[%c1_26, %c0_27, %c0_28] : memref<5x8x2xbf16, #tpu.memory_space<vmem>>, vector<1x8x2xbf16>
    %52 = vector.shape_cast %51 : vector<1x8x2xbf16> to vector<8x2xbf16>
    %53 = vector.extract_strided_slice %46 {offsets = [0, 1], sizes = [2, 64], strides = [1, 1]} : vector<2x68xbf16> to vector<2x64xbf16>
    %cst_29 = arith.constant dense<0.000000e+00> : vector<8x64xf32>
    %54 = tpu.matmul %52, %53, %cst_29 {dimension_numbers = #tpu.dot_dimension_numbers<[1], [0], [0], [1], [0, 0, 1, 1], [], []>} : vector<8x2xbf16>, vector<2x64xbf16>, vector<8x64xf32> -> vector<8x64xf32>
    %55 = arith.addf %50, %54 : vector<8x64xf32>
    %c2_30 = arith.constant 2 : index
    %c0_31 = arith.constant 0 : index
    %c0_32 = arith.constant 0 : index
    %56 = vector.load %arg5[%c2_30, %c0_31, %c0_32] : memref<5x8x2xbf16, #tpu.memory_space<vmem>>, vector<1x8x2xbf16>
    %57 = vector.shape_cast %56 : vector<1x8x2xbf16> to vector<8x2xbf16>
    %58 = vector.extract_strided_slice %46 {offsets = [0, 2], sizes = [2, 64], strides = [1, 1]} : vector<2x68xbf16> to vector<2x64xbf16>
    %cst_33 = arith.constant dense<0.000000e+00> : vector<8x64xf32>
    %59 = tpu.matmul %57, %58, %cst_33 {dimension_numbers = #tpu.dot_dimension_numbers<[1], [0], [0], [1], [0, 0, 1, 1], [], []>} : vector<8x2xbf16>, vector<2x64xbf16>, vector<8x64xf32> -> vector<8x64xf32>
    %60 = arith.addf %55, %59 : vector<8x64xf32>
    %c3_34 = arith.constant 3 : index
    %c0_35 = arith.constant 0 : index
    %c0_36 = arith.constant 0 : index
    %61 = vector.load %arg5[%c3_34, %c0_35, %c0_36] : memref<5x8x2xbf16, #tpu.memory_space<vmem>>, vector<1x8x2xbf16>
    %62 = vector.shape_cast %61 : vector<1x8x2xbf16> to vector<8x2xbf16>
    %63 = vector.extract_strided_slice %46 {offsets = [0, 3], sizes = [2, 64], strides = [1, 1]} : vector<2x68xbf16> to vector<2x64xbf16>
    %cst_37 = arith.constant dense<0.000000e+00> : vector<8x64xf32>
    %64 = tpu.matmul %62, %63, %cst_37 {dimension_numbers = #tpu.dot_dimension_numbers<[1], [0], [0], [1], [0, 0, 1, 1], [], []>} : vector<8x2xbf16>, vector<2x64xbf16>, vector<8x64xf32> -> vector<8x64xf32>
    %65 = arith.addf %60, %64 : vector<8x64xf32>
    %c4_38 = arith.constant 4 : index
    %c0_39 = arith.constant 0 : index
    %c0_40 = arith.constant 0 : index
    %66 = vector.load %arg5[%c4_38, %c0_39, %c0_40] : memref<5x8x2xbf16, #tpu.memory_space<vmem>>, vector<1x8x2xbf16>
    %67 = vector.shape_cast %66 : vector<1x8x2xbf16> to vector<8x2xbf16>
    %68 = vector.extract_strided_slice %46 {offsets = [0, 4], sizes = [2, 64], strides = [1, 1]} : vector<2x68xbf16> to vector<2x64xbf16>
    %cst_41 = arith.constant dense<0.000000e+00> : vector<8x64xf32>
    %69 = tpu.matmul %67, %68, %cst_41 {dimension_numbers = #tpu.dot_dimension_numbers<[1], [0], [0], [1], [0, 0, 1, 1], [], []>} : vector<8x2xbf16>, vector<2x64xbf16>, vector<8x64xf32> -> vector<8x64xf32>
    %70 = arith.addf %65, %69 : vector<8x64xf32>
    %c0_42 = arith.constant 0 : index
    %c0_43 = arith.constant 0 : index
    %71 = vector.load %arg6[%c0_42, %c0_43] : memref<8x1xf32, #tpu.memory_space<vmem>>, vector<8x1xf32>
    %72 = vector.broadcast %71 : vector<8x1xf32> to vector<8x64xf32>
    %73 = arith.mulf %70, %72 : vector<8x64xf32>
    %c0_44 = arith.constant 0 : index
    %c0_45 = arith.constant 0 : index
    %74 = vector.load %arg7[%c0_44, %c0_45] : memref<8x1xf32, #tpu.memory_space<vmem>>, vector<8x1xf32>
    %75 = vector.broadcast %74 : vector<8x1xf32> to vector<8x64xf32>
    %76 = arith.addf %73, %75 : vector<8x64xf32>
    %cst_46 = arith.constant 0.000000e+00 : f32
    %77 = vector.broadcast %cst_46 : f32 to vector<8x64xf32>
    %78 = arith.maximumf %76, %77 : vector<8x64xf32>
    %79 = arith.truncf %78 : vector<8x64xf32> to vector<8x64xbf16>
    %c0_47 = arith.constant 0 : index
    %c0_48 = arith.constant 0 : index
    %c0_49 = arith.constant 0 : index
    %80 = vector.load %arg8[%c0_47, %c0_48, %c0_49] : memref<1x8x64xbf16, #tpu.memory_space<vmem>>, vector<1x8x64xbf16>
    %81 = vector.shape_cast %80 : vector<1x8x64xbf16> to vector<8x64xbf16>
    %82 = vector.shape_cast %79 : vector<8x64xbf16> to vector<1x8x64xbf16>
    tpu.vector_store %arg8[%c0_47, %c0_48, %c0_49], %82 {strides = array<i32>} : memref<1x8x64xbf16, #tpu.memory_space<vmem>>, vector<1x8x64xbf16>,
    return
  }
  func.func @transform_0(%arg0: i32) -> (i32, i32, i32) {
    %c0_i32 = arith.constant 0 : i32
    %c0_i32_0 = arith.constant 0 : i32
    %c0_i32_1 = arith.constant 0 : i32
    return %arg0, %c0_i32, %c0_i32_0 : i32, i32, i32
  }
  func.func @transform_1(%arg0: i32) -> (i32, i32, i32) {
    %c0_i32 = arith.constant 0 : i32
    %c0_i32_0 = arith.constant 0 : i32
    %c0_i32_1 = arith.constant 0 : i32
    %c0_i32_2 = arith.constant 0 : i32
    return %c0_i32, %c0_i32_0, %c0_i32_1 : i32, i32, i32
  }
  func.func @transform_2(%arg0: i32) -> (i32, i32) {
    %c0_i32 = arith.constant 0 : i32
    %c0_i32_0 = arith.constant 0 : i32
    %c0_i32_1 = arith.constant 0 : i32
    return %c0_i32, %c0_i32_0 : i32, i32
  }
  func.func @transform_3(%arg0: i32) -> (i32, i32) {
    %c0_i32 = arith.constant 0 : i32
    %c0_i32_0 = arith.constant 0 : i32
    %c0_i32_1 = arith.constant 0 : i32
    return %c0_i32, %c0_i32_0 : i32, i32
  }
  func.func @transform_4(%arg0: i32) -> (i32, i32, i32) {
    %c0_i32 = arith.constant 0 : i32
    %c0_i32_0 = arith.constant 0 : i32
    %c0_i32_1 = arith.constant 0 : i32
    %c0_i32_2 = arith.constant 0 : i32
    return %c0_i32, %c0_i32_0, %c0_i32_1 : i32, i32, i32
  }
  func.func @transform_5(%arg0: i32) -> (i32, i32) {
    %c0_i32 = arith.constant 0 : i32
    %c0_i32_0 = arith.constant 0 : i32
    %c0_i32_1 = arith.constant 0 : i32
    return %c0_i32, %c0_i32_0 : i32, i32
  }
  func.func @transform_6(%arg0: i32) -> (i32, i32) {
    %c0_i32 = arith.constant 0 : i32
    %c0_i32_0 = arith.constant 0 : i32
    %c0_i32_1 = arith.constant 0 : i32
    return %c0_i32, %c0_i32_0 : i32, i32
  }
  func.func @transform_7(%arg0: i32) -> (i32, i32, i32) {
    %c0_i32 = arith.constant 0 : i32
    %c0_i32_0 = arith.constant 0 : i32
    %c0_i32_1 = arith.constant 0 : i32
    return %arg0, %c0_i32, %c0_i32_0 : i32, i32, i32
  }
}

</mosaic_0001>

<llo_original>
// kernel: tpu_custom_call.1
$region0: #{tpu_custom_call.1}
  #allocation0 [shape = 'u32[]', space=smem, size = 0x4, offset = 0x4, fixed_abs, tag = 'smem constant byte address 0x4 - core index']
  #allocation1 [shape = 'u32[144,128]{1,0:T(1,128)}', space=vmem, size = 0x12000, scoped, tag = 'internal scratch']
  %s0 = inlined_call_operand.vmem [shape: bf16[2,2,64], index: 0, kind: input, shape index: {}]
  %s1 = inlined_call_operand.vmem [shape: bf16[5,2,2], index: 1, kind: input, shape index: {}]
  %s2 = inlined_call_operand.vmem [shape: f32[2,1], index: 2, kind: input, shape index: {}]
  %s3 = inlined_call_operand.vmem [shape: f32[2,1], index: 3, kind: input, shape index: {}]
  %s4 = inlined_call_operand.vmem [shape: bf16[5,8,2], index: 4, kind: input, shape index: {}]
  %s5 = inlined_call_operand.vmem [shape: f32[8,1], index: 5, kind: input, shape index: {}]
  %s6 = inlined_call_operand.vmem [shape: f32[8,1], index: 6, kind: input, shape index: {}]
  %s7 = inlined_call_operand.hbm [shape: bf16[2,8,64], index: 7, kind: output, shape index: {}]
  %s8 = sld [smem:[#allocation0]]
  $region61: #{tpu_custom_call.1} parent=0
    _
  %s10 = ssub.s32 1, %s8
  %s11 = scalar_select 0, %s10, %s8
  $region1: #{tpu_custom_call.1} parent=0
    #allocation2 [shape = 'u8[4096]{0}', space=vmem, size = 0x1000, scoped, tag = 'output window, operand 0']
    #allocation3 [shape = 's32[2]{0}', space=sflag, size = 0x8, scoped, tag = 'scoped memory for tpu_custom_call.1']
    %12 = vsyncpa [#allocation3], 0
    %s13 = scalar_lea.sflag [#allocation3], 1
    %14 = vsyncpa %s13, 0
    loop: start=0, step=1, limit=4
    $region2: #{tpu_custom_call.1} parent=1 // loop_pre_header
      _
    $region3: #{tpu_custom_call.1} parent=1 // loop_header
      %s16 = sphi 0, %s20
      %p17 = scmp.ge.s32.totalorder %s16, 4
      %s26 = sphi 0, %s28
      %s29 = sphi 0, %s26
      %s30 = sphi 0, %s29
      %s46 = sphi 0, %s30
      %s50 = sphi 0, %s50
      %s52 = sphi 0, %s50
      %s53 = sphi 0, %s52
      %s67 = sphi 0, %s53
      %s71 = sphi 0, %s71
      %s73 = sphi 0, %s71
      %s74 = sphi 0, %s73
      %s88 = sphi 0, %s74
      %s92 = sphi 0, %s92
      %s94 = sphi 0, %s92
      %s95 = sphi 0, %s94
      %s109 = sphi 0, %s95
      %s113 = sphi 0, %s113
      %s115 = sphi 0, %s113
      %s116 = sphi 0, %s115
      %s130 = sphi 0, %s116
      %s134 = sphi 0, %s134
      %s136 = sphi 0, %s134
      %s137 = sphi 0, %s136
      %s151 = sphi 0, %s137
      %s155 = sphi 0, %s155
      %s157 = sphi 0, %s155
      %s158 = sphi 0, %s157
      %s172 = sphi 0, %s158
      %s178 = sphi 0, %s180
      %s181 = sphi 0, %s178
      %s182 = sphi 0, %s181
      %s198 = sphi 0, %s182
    $region4: #{tpu_custom_call.1} parent=1 // loop_header_branch
      %19 = sbr.rel (%p17) target = $region8
    $region5: #{tpu_custom_call.1} parent=1 // loop_body
      %s21 = ssub.s32 %s16, 1
      %s22 = ssub.s32 %s16, 2
      %s23 = sadd.s32 %s16, 1
      %s24 = ssub.s32 %s16, %s23
      %p25 = scmp.eq.s32.totalorder %s24, 0
      %s27 = sadd.s32 %s26, 1
      %s28 = scalar_select %p25, %s26, %s27
      %p31 = pneg %p25
      %p32 = scmp.eq.s32.totalorder %s16, 1
      %p33 = por %p31, %p32
      %p34 = scmp.ne.s32.totalorder %s26, %s29
      %p35 = scmp.eq.s32.totalorder %s16, 0
      %p36 = por %p34, %p35
      %p37 = scmp.ne.s32.totalorder %s26, %s29
      %p38 = scmp.eq.s32.totalorder %s21, 1
      %p39 = por %p37, %p38
      %p40 = scmp.ne.s32.totalorder %s29, %s30
      %p41 = scmp.eq.s32.totalorder %s21, 0
      %p42 = por %p40, %p41
      %p43 = scmp.ne.s32.totalorder %s29, %s30
      %p44 = scmp.eq.s32.totalorder %s22, 1
      %p45 = por %p43, %p44
      %p47 = scmp.ne.s32.totalorder %s30, %s46
      %p48 = scmp.eq.s32.totalorder %s22, 0
      %p49 = por %p47, %p48
      %s51 = sadd.s32 %s50, 1
      %p54 = scmp.eq.s32.totalorder %s16, 1
      %p55 = scmp.ne.s32.totalorder %s50, %s52
      %p56 = scmp.eq.s32.totalorder %s16, 0
      %p57 = por %p55, %p56
      %p58 = scmp.ne.s32.totalorder %s50, %s52
      %p59 = scmp.eq.s32.totalorder %s21, 1
      %p60 = por %p58, %p59
      %p61 = scmp.ne.s32.totalorder %s52, %s53
      %p62 = scmp.eq.s32.totalorder %s21, 0
      %p63 = por %p61, %p62
      %p64 = scmp.ne.s32.totalorder %s52, %s53
      %p65 = scmp.eq.s32.totalorder %s22, 1
      %p66 = por %p64, %p65
      %p68 = scmp.ne.s32.totalorder %s53, %s67
      %p69 = scmp.eq.s32.totalorder %s22, 0
      %p70 = por %p68, %p69
      %s72 = sadd.s32 %s71, 1
      %p75 = scmp.eq.s32.totalorder %s16, 1
      %p76 = scmp.ne.s32.totalorder %s71, %s73
      %p77 = scmp.eq.s32.totalorder %s16, 0
      %p78 = por %p76, %p77
      %p79 = scmp.ne.s32.totalorder %s71, %s73
      %p80 = scmp.eq.s32.totalorder %s21, 1
      %p81 = por %p79, %p80
      %p82 = scmp.ne.s32.totalorder %s73, %s74
      %p83 = scmp.eq.s32.totalorder %s21, 0
      %p84 = por %p82, %p83
      %p85 = scmp.ne.s32.totalorder %s73, %s74
      %p86 = scmp.eq.s32.totalorder %s22, 1
      %p87 = por %p85, %p86
      %p89 = scmp.ne.s32.totalorder %s74, %s88
      %p90 = scmp.eq.s32.totalorder %s22, 0
      %p91 = por %p89, %p90
      %s93 = sadd.s32 %s92, 1
      %p96 = scmp.eq.s32.totalorder %s16, 1
      %p97 = scmp.ne.s32.totalorder %s92, %s94
      %p98 = scmp.eq.s32.totalorder %s16, 0
      %p99 = por %p97, %p98
      %p100 = scmp.ne.s32.totalorder %s92, %s94
      %p101 = scmp.eq.s32.totalorder %s21, 1
      %p102 = por %p100, %p101
      %p103 = scmp.ne.s32.totalorder %s94, %s95
      %p104 = scmp.eq.s32.totalorder %s21, 0
      %p105 = por %p103, %p104
      %p106 = scmp.ne.s32.totalorder %s94, %s95
      %p107 = scmp.eq.s32.totalorder %s22, 1
      %p108 = por %p106, %p107
      %p110 = scmp.ne.s32.totalorder %s95, %s109
      %p111 = scmp.eq.s32.totalorder %s22, 0
      %p112 = por %p110, %p111
      %s114 = sadd.s32 %s113, 1
      %p117 = scmp.eq.s32.totalorder %s16, 1
      %p118 = scmp.ne.s32.totalorder %s113, %s115
      %p119 = scmp.eq.s32.totalorder %s16, 0
      %p120 = por %p118, %p119
      %p121 = scmp.ne.s32.totalorder %s113, %s115
      %p122 = scmp.eq.s32.totalorder %s21, 1
      %p123 = por %p121, %p122
      %p124 = scmp.ne.s32.totalorder %s115, %s116
      %p125 = scmp.eq.s32.totalorder %s21, 0
      %p126 = por %p124, %p125
      %p127 = scmp.ne.s32.totalorder %s115, %s116
      %p128 = scmp.eq.s32.totalorder %s22, 1
      %p129 = por %p127, %p128
      %p131 = scmp.ne.s32.totalorder %s116, %s130
      %p132 = scmp.eq.s32.totalorder %s22, 0
      %p133 = por %p131, %p132
      %s135 = sadd.s32 %s134, 1
      %p138 = scmp.eq.s32.totalorder %s16, 1
      %p139 = scmp.ne.s32.totalorder %s134, %s136
      %p140 = scmp.eq.s32.totalorder %s16, 0
      %p141 = por %p139, %p140
      %p142 = scmp.ne.s32.totalorder %s134, %s136
      %p143 = scmp.eq.s32.totalorder %s21, 1
      %p144 = por %p142, %p143
      %p145 = scmp.ne.s32.totalorder %s136, %s137
      %p146 = scmp.eq.s32.totalorder %s21, 0
      %p147 = por %p145, %p146
      %p148 = scmp.ne.s32.totalorder %s136, %s137
      %p149 = scmp.eq.s32.totalorder %s22, 1
      %p150 = por %p148, %p149
      %p152 = scmp.ne.s32.totalorder %s137, %s151
      %p153 = scmp.eq.s32.totalorder %s22, 0
      %p154 = por %p152, %p153
      %s156 = sadd.s32 %s155, 1
      %p159 = scmp.eq.s32.totalorder %s16, 1
      %p160 = scmp.ne.s32.totalorder %s155, %s157
      %p161 = scmp.eq.s32.totalorder %s16, 0
      %p162 = por %p160, %p161
      %p163 = scmp.ne.s32.totalorder %s155, %s157
      %p164 = scmp.eq.s32.totalorder %s21, 1
      %p165 = por %p163, %p164
      %p166 = scmp.ne.s32.totalorder %s157, %s158
      %p167 = scmp.eq.s32.totalorder %s21, 0
      %p168 = por %p166, %p167
      %p169 = scmp.ne.s32.totalorder %s157, %s158
      %p170 = scmp.eq.s32.totalorder %s22, 1
      %p171 = por %p169, %p170
      %p173 = scmp.ne.s32.totalorder %s158, %s172
      %p174 = scmp.eq.s32.totalorder %s22, 0
      %p175 = por %p173, %p174
      %s176 = ssub.s32 %s16, %s23
      %p177 = scmp.eq.s32.totalorder %s176, 0
      %s179 = sadd.s32 %s178, 1
      %s180 = scalar_select %p177, %s178, %s179
      %p183 = pneg %p177
      %p184 = scmp.eq.s32.totalorder %s16, 1
      %p185 = por %p183, %p184
      %p186 = scmp.ne.s32.totalorder %s178, %s181
      %p187 = scmp.eq.s32.totalorder %s16, 0
      %p188 = por %p186, %p187
      %p189 = scmp.ne.s32.totalorder %s178, %s181
      %p190 = scmp.eq.s32.totalorder %s21, 1
      %p191 = por %p189, %p190
      %p192 = scmp.ne.s32.totalorder %s181, %s182
      %p193 = scmp.eq.s32.totalorder %s21, 0
      %p194 = por %p192, %p193
      %p195 = scmp.ne.s32.totalorder %s181, %s182
      %p196 = scmp.eq.s32.totalorder %s22, 1
      %p197 = por %p195, %p196
      %p199 = scmp.ne.s32.totalorder %s182, %s198
      %p200 = scmp.eq.s32.totalorder %s22, 0
      %p201 = por %p199, %p200
      %p202 = scmp.le.s32.totalorder 1, %s16
      %p203 = scmp.lt.s32.totalorder %s16, 3
      %p204 = pnand %p202, %p203
      %p205 = pneg %p204
      // Predicated region
      $region9: #{tpu_custom_call.1} parent=5 // pred_check
        _
      $region10: #{tpu_custom_call.1} parent=5 // pred_check_branch
        %207 = sbr.rel (%p204) target = $region12
      $region11: #{tpu_custom_call.1} parent=5 // pred_region
        %s208 = ssub.s32 %s16, 1
        // Predicated region
        $region13: #{tpu_custom_call.1} parent=11 // pred_check
          %p209 = pneg %p63
        $region14: #{tpu_custom_call.1} parent=11 // pred_check_branch
          %211 = sbr.rel (%p209) target = $region16
        $region15: #{tpu_custom_call.1} parent=11 // pred_region
          _
        $region16: #{tpu_custom_call.1} parent=11 // pred_fallthru
          _
        // Predicated region
        $region17: #{tpu_custom_call.1} parent=11 // pred_check
          %p212 = pneg %p84
        $region18: #{tpu_custom_call.1} parent=11 // pred_check_branch
          %214 = sbr.rel (%p212) target = $region20
        $region19: #{tpu_custom_call.1} parent=11 // pred_region
          _
        $region20: #{tpu_custom_call.1} parent=11 // pred_fallthru
          _
        // Predicated region
        $region21: #{tpu_custom_call.1} parent=11 // pred_check
          %p215 = pneg %p105
        $region22: #{tpu_custom_call.1} parent=11 // pred_check_branch
          %217 = sbr.rel (%p215) target = $region24
        $region23: #{tpu_custom_call.1} parent=11 // pred_region
          _
        $region24: #{tpu_custom_call.1} parent=11 // pred_fallthru
          _
        // Predicated region
        $region25: #{tpu_custom_call.1} parent=11 // pred_check
          %p218 = pneg %p126
        $region26: #{tpu_custom_call.1} parent=11 // pred_check_branch
          %220 = sbr.rel (%p218) target = $region28
        $region27: #{tpu_custom_call.1} parent=11 // pred_region
          _
        $region28: #{tpu_custom_call.1} parent=11 // pred_fallthru
          _
        // Predicated region
        $region29: #{tpu_custom_call.1} parent=11 // pred_check
          %p221 = pneg %p147
        $region30: #{tpu_custom_call.1} parent=11 // pred_check_branch
          %223 = sbr.rel (%p221) target = $region32
        $region31: #{tpu_custom_call.1} parent=11 // pred_region
          _
        $region32: #{tpu_custom_call.1} parent=11 // pred_fallthru
          _
        // Predicated region
        $region33: #{tpu_custom_call.1} parent=11 // pred_check
          %p224 = pneg %p168
        $region34: #{tpu_custom_call.1} parent=11 // pred_check_branch
          %226 = sbr.rel (%p224) target = $region36
        $region35: #{tpu_custom_call.1} parent=11 // pred_region
          _
        $region36: #{tpu_custom_call.1} parent=11 // pred_fallthru
          _
      $region12: #{tpu_custom_call.1} parent=5 // pred_fallthru
        _
      %p227 = scmp.lt.s32.totalorder %s16, 2
      // Predicated region
      $region37: #{tpu_custom_call.1} parent=5 // pred_check
        %p228 = pneg %p227
      $region38: #{tpu_custom_call.1} parent=5 // pred_check_branch
        %230 = sbr.rel (%p228) target = $region40
      $region39: #{tpu_custom_call.1} parent=5 // pred_region
        // Predicated region
        $region41: #{tpu_custom_call.1} parent=39 // pred_check
          %p231 = pneg %p36
        $region42: #{tpu_custom_call.1} parent=39 // pred_check_branch
          %233 = sbr.rel (%p231) target = $region44
        $region43: #{tpu_custom_call.1} parent=39 // pred_region
          %p234 = scmp.lt.s32.totalorder %s16, 1
          %s235 = scalar_select %p234, %s16, 1
          %s236 = scalar_lea.vmem %s0, %s235
        $region44: #{tpu_custom_call.1} parent=39 // pred_fallthru
          _
      $region40: #{tpu_custom_call.1} parent=5 // pred_fallthru
        _
      %p237 = scmp.le.s32.totalorder 1, %s16
      %p238 = scmp.lt.s32.totalorder %s16, 3
      %p239 = pnand %p237, %p238
      %p240 = pneg %p239
      // Predicated region
      $region45: #{tpu_custom_call.1} parent=5 // pred_check
        _
      $region46: #{tpu_custom_call.1} parent=5 // pred_check_branch
        %242 = sbr.rel (%p239) target = $region48
      $region47: #{tpu_custom_call.1} parent=5 // pred_region
        %s243 = ssub.s32 %s16, 1
        %p244 = scmp.lt.s32.totalorder %s21, 1
        %s245 = scalar_select %p244, %s21, 1
        %s246 = scalar_lea.vmem %s0, %s245
        %p247 = pneg %p42
        %p248 = pneg %p39
        %p249 = pneg %p63
        %p250 = pneg %p60
        %p251 = pneg %p84
        %p252 = pneg %p81
        %p253 = pneg %p105
        %p254 = pneg %p102
        %p255 = pneg %p126
        %p256 = pneg %p123
        %p257 = pneg %p147
        %p258 = pneg %p144
        %p259 = pneg %p168
        %p260 = pneg %p165
        %p261 = pneg %p194
        %p262 = pneg %p191
        %s263 = sand.u32 %s181, 1
        %s264 = scalar_lea.sflag [#allocation3], %s263
        %s265 = sand.u32 %s181, 1
        %s266 = smul.addr %s265, 4
        %s267 = scalar_lea.vmem [#allocation2], %s266
        %p268 = scmp.lt.s32.totalorder %s21, 1
        %s269 = scalar_select %p268, %s21, 1
        %s270 = scalar_lea.vmem %s0, %s269
        %v272 = vld [vmem:[%s270] sm:$0x1]
        %v275 = vunpack.c.l.s4 1966171168
        %v276 = vunpack.c.0.s8 %v275
        %v277 = vlaneseq
        %v278 = vshrl.u32 %v277, 7
        %v279 = vsub.s32 %v276, %v278
        %v280 = vrot.slane %v272, %v279
        %v282 = vunpack.c.l.s4 1966171168
        %v283 = vunpack.c.0.s8 %v282
        %v284 = vlaneseq
        %v285 = vshrl.u32 %v284, 7
        %v286 = vsub.s32 %v283, %v285
        %v287 = vrot.slane %v280, %v286
        %288 = vrot.lane.b32.xlu0 %v287, 126
        %v289 = vpop.permute.xlu0 %288
        %290 = vrot.lane.b32.xlu0 %v287, 2
        %v291 = vpop.permute.xlu0 %290
        %292 = vrot.lane.b32.xlu0 %v287, 4
        %v293 = vpop.permute.xlu0 %292
        %294 = vrot.lane.b32.xlu0 %v287, 6
        %v295 = vpop.permute.xlu0 %294
        %vm296 = vcmask 7168
        %v299 = vsel %vm296, %v289, %v272
        %vm300 = vcmask 15360
        %v302 = vsel %vm300, %v299, %v291
        %vm303 = vcmask 539648
        %v305 = vsel %vm303, %v302, %v293
        %vm306 = vcmask 547840
        %v308 = vsel %vm306, %v305, %v295
        %v309 = vld [vmem:[%s1] sm:$0x1]
        %s310 = scalar_lea.vmem %s1, 1
        %v311 = vld [vmem:[%s310] sm:$0x1]
        %313 = vrot.lane.b32.xlu0 %v308, 127
        %v314 = vpop.permute.xlu0 %313
        %v316 = vsel %vm300, %v311, 0
        %vm318 = vcmask 1040384
        %v320 = vsel %vm318, %v314, 0
        %322 = vmatprep.subr.bf16.mxu0 0
        %323 = vmatpush1.bf16.msra.mxu0 %v320
        %324 = vmatprep.subr.bf16.mxu0 0
        %325 = vmatpush1.bf16.msra.mxu0 0
        %326 = vmatprep.subr.bf16.mxu0 0
        %327 = vmatpush1.bf16.msra.mxu0 0
        %328 = vmatprep.subr.bf16.mxu0 0
        %329 = vmatpush1.bf16.msra.mxu0 0
        %330 = vmatprep.subr.bf16.mxu0 0
        %331 = vmatpush1.bf16.msra.mxu0 0
        %332 = vmatprep.subr.bf16.mxu0 0
        %333 = vmatpush1.bf16.msra.mxu0 0
        %334 = vmatprep.subr.bf16.mxu0 0
        %335 = vmatpush1.bf16.msra.mxu0 0
        %336 = vmatprep.subr.bf16.mxu0 0
        %337 = vmatpush1.bf16.msra.mxu0 0
        %338 = vmatprep.subr.bf16.mxu0 0
        %339 = vmatpush1.bf16.msra.mxu0 0
        %340 = vmatprep.subr.bf16.mxu0 0
        %341 = vmatpush1.bf16.msra.mxu0 0
        %342 = vmatprep.subr.bf16.mxu0 0
        %343 = vmatpush1.bf16.msra.mxu0 0
        %344 = vmatprep.subr.bf16.mxu0 0
        %345 = vmatpush1.bf16.msra.mxu0 0
        %346 = vmatprep.subr.bf16.mxu0 0
        %347 = vmatpush1.bf16.msra.mxu0 0
        %348 = vmatprep.subr.bf16.mxu0 0
        %349 = vmatpush1.bf16.msra.mxu0 0
        %350 = vmatprep.subr.bf16.mxu0 0
        %351 = vmatpush1.bf16.msra.mxu0 0
        %352 = vmatprep.subr.bf16.mxu0 0
        %353 = vmatpush1.bf16.msra.mxu0 0
        %354 = vmatprep.mubr.bf16.mxu0 0
        %355 = vmatmul.mubr.bf16.gmra.mrb[0].mxu0 %v316
        %v356 = vpop.f32.mrb[0].mxu0
        %v357 = vadd.f32 0.0, %v356
        %v358 = vpop.f32.mrb[0].mxu0
        %v359 = vpop.f32.mrb[0].mxu0
        %v360 = vpop.f32.mrb[0].mxu0
        %361 = vdwg.mxu0
        %v363 = vsel %vm300, %v309, 0
        %v365 = vsel %vm318, %v308, 0
        %367 = vmatprep.subr.bf16.mxu0 0
        %368 = vmatpush1.bf16.msra.mxu0 %v365
        %369 = vmatprep.subr.bf16.mxu0 0
        %370 = vmatpush1.bf16.msra.mxu0 0
        %371 = vmatprep.subr.bf16.mxu0 0
        %372 = vmatpush1.bf16.msra.mxu0 0
        %373 = vmatprep.subr.bf16.mxu0 0
        %374 = vmatpush1.bf16.msra.mxu0 0
        %375 = vmatprep.subr.bf16.mxu0 0
        %376 = vmatpush1.bf16.msra.mxu0 0
        %377 = vmatprep.subr.bf16.mxu0 0
        %378 = vmatpush1.bf16.msra.mxu0 0
        %379 = vmatprep.subr.bf16.mxu0 0
        %380 = vmatpush1.bf16.msra.mxu0 0
        %381 = vmatprep.subr.bf16.mxu0 0
        %382 = vmatpush1.bf16.msra.mxu0 0
        %383 = vmatprep.subr.bf16.mxu0 0
        %384 = vmatpush1.bf16.msra.mxu0 0
        %385 = vmatprep.subr.bf16.mxu0 0
        %386 = vmatpush1.bf16.msra.mxu0 0
        %387 = vmatprep.subr.bf16.mxu0 0
        %388 = vmatpush1.bf16.msra.mxu0 0
        %389 = vmatprep.subr.bf16.mxu0 0
        %390 = vmatpush1.bf16.msra.mxu0 0
        %391 = vmatprep.subr.bf16.mxu0 0
        %392 = vmatpush1.bf16.msra.mxu0 0
        %393 = vmatprep.subr.bf16.mxu0 0
        %394 = vmatpush1.bf16.msra.mxu0 0
        %395 = vmatprep.subr.bf16.mxu0 0
        %396 = vmatpush1.bf16.msra.mxu0 0
        %397 = vmatprep.subr.bf16.mxu0 0
        %398 = vmatpush1.bf16.msra.mxu0 0
        %399 = vmatprep.mubr.bf16.mxu0 0
        %400 = vmatmul.mubr.bf16.gmra.mrb[0].mxu0 %v363
        %v401 = vpop.f32.mrb[0].mxu0
        %v402 = vadd.f32 %v357, %v401
        %v403 = vpop.f32.mrb[0].mxu0
        %v404 = vpop.f32.mrb[0].mxu0
        %v405 = vpop.f32.mrb[0].mxu0
        %406 = vdwg.mxu0
        %s407 = scalar_lea.vmem %s1, 2
        %v408 = vld [vmem:[%s407] sm:$0x1]
        %409 = vrot.lane.b32.xlu0 %v308, 126
        %v410 = vpop.permute.xlu0 %409
        %v412 = vsel %vm300, %v408, 0
        %v415 = vsel %vm318, %v410, 0
        %417 = vmatprep.subr.bf16.mxu0 0
        %418 = vmatpush1.bf16.msra.mxu0 %v415
        %419 = vmatprep.subr.bf16.mxu0 0
        %420 = vmatpush1.bf16.msra.mxu0 0
        %421 = vmatprep.subr.bf16.mxu0 0
        %422 = vmatpush1.bf16.msra.mxu0 0
        %423 = vmatprep.subr.bf16.mxu0 0
        %424 = vmatpush1.bf16.msra.mxu0 0
        %425 = vmatprep.subr.bf16.mxu0 0
        %426 = vmatpush1.bf16.msra.mxu0 0
        %427 = vmatprep.subr.bf16.mxu0 0
        %428 = vmatpush1.bf16.msra.mxu0 0
        %429 = vmatprep.subr.bf16.mxu0 0
        %430 = vmatpush1.bf16.msra.mxu0 0
        %431 = vmatprep.subr.bf16.mxu0 0
        %432 = vmatpush1.bf16.msra.mxu0 0
        %433 = vmatprep.subr.bf16.mxu0 0
        %434 = vmatpush1.bf16.msra.mxu0 0
        %435 = vmatprep.subr.bf16.mxu0 0
        %436 = vmatpush1.bf16.msra.mxu0 0
        %437 = vmatprep.subr.bf16.mxu0 0
        %438 = vmatpush1.bf16.msra.mxu0 0
        %439 = vmatprep.subr.bf16.mxu0 0
        %440 = vmatpush1.bf16.msra.mxu0 0
        %441 = vmatprep.subr.bf16.mxu0 0
        %442 = vmatpush1.bf16.msra.mxu0 0
        %443 = vmatprep.subr.bf16.mxu0 0
        %444 = vmatpush1.bf16.msra.mxu0 0
        %445 = vmatprep.subr.bf16.mxu0 0
        %446 = vmatpush1.bf16.msra.mxu0 0
        %447 = vmatprep.subr.bf16.mxu0 0
        %448 = vmatpush1.bf16.msra.mxu0 0
        %449 = vmatprep.mubr.bf16.mxu0 0
        %450 = vmatmul.mubr.bf16.gmra.mrb[0].mxu0 %v412
        %v451 = vpop.f32.mrb[0].mxu0
        %v452 = vadd.f32 0.0, %v451
        %v453 = vpop.f32.mrb[0].mxu0
        %v454 = vpop.f32.mrb[0].mxu0
        %v455 = vpop.f32.mrb[0].mxu0
        %456 = vdwg.mxu0
        %v457 = vadd.f32 %v402, %v452
        %s458 = scalar_lea.vmem %s1, 3
        %v459 = vld [vmem:[%s458] sm:$0x1]
        %460 = vrot.lane.b32.xlu0 %v308, 125
        %v461 = vpop.permute.xlu0 %460
        %v463 = vsel %vm300, %v459, 0
        %v466 = vsel %vm318, %v461, 0
        %468 = vmatprep.subr.bf16.mxu0 0
        %469 = vmatpush1.bf16.msra.mxu0 %v466
        %470 = vmatprep.subr.bf16.mxu0 0
        %471 = vmatpush1.bf16.msra.mxu0 0
        %472 = vmatprep.subr.bf16.mxu0 0
        %473 = vmatpush1.bf16.msra.mxu0 0
        %474 = vmatprep.subr.bf16.mxu0 0
        %475 = vmatpush1.bf16.msra.mxu0 0
        %476 = vmatprep.subr.bf16.mxu0 0
        %477 = vmatpush1.bf16.msra.mxu0 0
        %478 = vmatprep.subr.bf16.mxu0 0
        %479 = vmatpush1.bf16.msra.mxu0 0
        %480 = vmatprep.subr.bf16.mxu0 0
        %481 = vmatpush1.bf16.msra.mxu0 0
        %482 = vmatprep.subr.bf16.mxu0 0
        %483 = vmatpush1.bf16.msra.mxu0 0
        %484 = vmatprep.subr.bf16.mxu0 0
        %485 = vmatpush1.bf16.msra.mxu0 0
        %486 = vmatprep.subr.bf16.mxu0 0
        %487 = vmatpush1.bf16.msra.mxu0 0
        %488 = vmatprep.subr.bf16.mxu0 0
        %489 = vmatpush1.bf16.msra.mxu0 0
        %490 = vmatprep.subr.bf16.mxu0 0
        %491 = vmatpush1.bf16.msra.mxu0 0
        %492 = vmatprep.subr.bf16.mxu0 0
        %493 = vmatpush1.bf16.msra.mxu0 0
        %494 = vmatprep.subr.bf16.mxu0 0
        %495 = vmatpush1.bf16.msra.mxu0 0
        %496 = vmatprep.subr.bf16.mxu0 0
        %497 = vmatpush1.bf16.msra.mxu0 0
        %498 = vmatprep.subr.bf16.mxu0 0
        %499 = vmatpush1.bf16.msra.mxu0 0
        %500 = vmatprep.mubr.bf16.mxu0 0
        %501 = vmatmul.mubr.bf16.gmra.mrb[0].mxu0 %v463
        %v502 = vpop.f32.mrb[0].mxu0
        %v503 = vadd.f32 0.0, %v502
        %v504 = vpop.f32.mrb[0].mxu0
        %v505 = vpop.f32.mrb[0].mxu0
        %v506 = vpop.f32.mrb[0].mxu0
        %507 = vdwg.mxu0
        %v508 = vadd.f32 %v457, %v503
        %s509 = scalar_lea.vmem %s1, 4
        %v510 = vld [vmem:[%s509] sm:$0x1]
        %511 = vrot.lane.b32.xlu0 %v308, 124
        %v512 = vpop.permute.xlu0 %511
        %v514 = vsel %vm300, %v510, 0
        %v517 = vsel %vm318, %v512, 0
        %519 = vmatprep.subr.bf16.mxu0 0
        %520 = vmatpush1.bf16.msra.mxu0 %v517
        %521 = vmatprep.subr.bf16.mxu0 0
        %522 = vmatpush1.bf16.msra.mxu0 0
        %523 = vmatprep.subr.bf16.mxu0 0
        %524 = vmatpush1.bf16.msra.mxu0 0
        %525 = vmatprep.subr.bf16.mxu0 0
        %526 = vmatpush1.bf16.msra.mxu0 0
        %527 = vmatprep.subr.bf16.mxu0 0
        %528 = vmatpush1.bf16.msra.mxu0 0
        %529 = vmatprep.subr.bf16.mxu0 0
        %530 = vmatpush1.bf16.msra.mxu0 0
        %531 = vmatprep.subr.bf16.mxu0 0
        %532 = vmatpush1.bf16.msra.mxu0 0
        %533 = vmatprep.subr.bf16.mxu0 0
        %534 = vmatpush1.bf16.msra.mxu0 0
        %535 = vmatprep.subr.bf16.mxu0 0
        %536 = vmatpush1.bf16.msra.mxu0 0
        %537 = vmatprep.subr.bf16.mxu0 0
        %538 = vmatpush1.bf16.msra.mxu0 0
        %539 = vmatprep.subr.bf16.mxu0 0
        %540 = vmatpush1.bf16.msra.mxu0 0
        %541 = vmatprep.subr.bf16.mxu0 0
        %542 = vmatpush1.bf16.msra.mxu0 0
        %543 = vmatprep.subr.bf16.mxu0 0
        %544 = vmatpush1.bf16.msra.mxu0 0
        %545 = vmatprep.subr.bf16.mxu0 0
        %546 = vmatpush1.bf16.msra.mxu0 0
        %547 = vmatprep.subr.bf16.mxu0 0
        %548 = vmatpush1.bf16.msra.mxu0 0
        %549 = vmatprep.subr.bf16.mxu0 0
        %550 = vmatpush1.bf16.msra.mxu0 0
        %551 = vmatprep.mubr.bf16.mxu0 0
        %552 = vmatmul.mubr.bf16.gmra.mrb[0].mxu0 %v514
        %v553 = vpop.f32.mrb[0].mxu0
        %v554 = vadd.f32 0.0, %v553
        %v555 = vpop.f32.mrb[0].mxu0
        %v556 = vpop.f32.mrb[0].mxu0
        %v557 = vpop.f32.mrb[0].mxu0
        %558 = vdwg.mxu0
        %v559 = vadd.f32 %v508, %v554
        %v560 = vld [vmem:[%s2] sm:$0x3]
        %562 = vset.pattern.permute.xlu0 0
        %563 = vperm.xlu0 %562, %v560
        %v564 = vpop.permute.xlu0 %563
        %v566 = vmul.f32 %v559, %v564
        %v567 = vld [vmem:[%s3] sm:$0x3]
        %569 = vset.pattern.permute.xlu0 0
        %570 = vperm.xlu0 %569, %v567
        %v571 = vpop.permute.xlu0 %570
        %v573 = vadd.f32 %v566, %v571
        %v574 = vmax.f32 %v573, 0.0
        %v575 = vunpack.c.l.bf16 %v272
        %v576 = vadd.f32 %v574, %v575
        %v577 = vpack.c.bf16 %v576, %v576
        %579 = vrot.lane.b32.xlu0 %v577, 126
        %v580 = vpop.permute.xlu0 %579
        %581 = vrot.lane.b32.xlu0 %v577, 2
        %v582 = vpop.permute.xlu0 %581
        %583 = vrot.lane.b32.xlu0 %v577, 4
        %v584 = vpop.permute.xlu0 %583
        %585 = vrot.lane.b32.xlu0 %v577, 6
        %v586 = vpop.permute.xlu0 %585
        %v589 = vsel %vm296, %v580, %v577
        %v591 = vsel %vm300, %v589, %v582
        %v593 = vsel %vm303, %v591, %v584
        %v595 = vsel %vm306, %v593, %v586
        %v596 = vld [vmem:[%s4] sm:$0xf]
        %s597 = scalar_lea.vmem %s4, 4
        %v598 = vld [vmem:[%s597] sm:$0xf]
        %600 = vrot.lane.b32.xlu0 %v595, 127
        %v601 = vpop.permute.xlu0 %600
        %v603 = vsel %vm300, %v598, 0
        %v606 = vsel %vm318, %v601, 0
        %608 = vmatprep.subr.bf16.mxu0 0
        %609 = vmatpush1.bf16.msra.mxu0 %v606
        %610 = vmatprep.subr.bf16.mxu0 0
        %611 = vmatpush1.bf16.msra.mxu0 0
        %612 = vmatprep.subr.bf16.mxu0 0
        %613 = vmatpush1.bf16.msra.mxu0 0
        %614 = vmatprep.subr.bf16.mxu0 0
        %615 = vmatpush1.bf16.msra.mxu0 0
        %616 = vmatprep.subr.bf16.mxu0 0
        %617 = vmatpush1.bf16.msra.mxu0 0
        %618 = vmatprep.subr.bf16.mxu0 0
        %619 = vmatpush1.bf16.msra.mxu0 0
        %620 = vmatprep.subr.bf16.mxu0 0
        %621 = vmatpush1.bf16.msra.mxu0 0
        %622 = vmatprep.subr.bf16.mxu0 0
        %623 = vmatpush1.bf16.msra.mxu0 0
        %624 = vmatprep.subr.bf16.mxu0 0
        %625 = vmatpush1.bf16.msra.mxu0 0
        %626 = vmatprep.subr.bf16.mxu0 0
        %627 = vmatpush1.bf16.msra.mxu0 0
        %628 = vmatprep.subr.bf16.mxu0 0
        %629 = vmatpush1.bf16.msra.mxu0 0
        %630 = vmatprep.subr.bf16.mxu0 0
        %631 = vmatpush1.bf16.msra.mxu0 0
        %632 = vmatprep.subr.bf16.mxu0 0
        %633 = vmatpush1.bf16.msra.mxu0 0
        %634 = vmatprep.subr.bf16.mxu0 0
        %635 = vmatpush1.bf16.msra.mxu0 0
        %636 = vmatprep.subr.bf16.mxu0 0
        %637 = vmatpush1.bf16.msra.mxu0 0
        %638 = vmatprep.subr.bf16.mxu0 0
        %639 = vmatpush1.bf16.msra.mxu0 0
        %640 = vmatprep.mubr.bf16.mxu0 0
        %641 = vmatmul.mubr.bf16.gmra.mrb[0].mxu0 %v603
        %v642 = vpop.f32.mrb[0].mxu0
        %v643 = vadd.f32 0.0, %v642
        %v644 = vpop.f32.mrb[0].mxu0
        %v645 = vpop.f32.mrb[0].mxu0
        %v646 = vpop.f32.mrb[0].mxu0
        %647 = vdwg.mxu0
        %v649 = vsel %vm300, %v596, 0
        %v651 = vsel %vm318, %v595, 0
        %653 = vmatprep.subr.bf16.mxu0 0
        %654 = vmatpush1.bf16.msra.mxu0 %v651
        %655 = vmatprep.subr.bf16.mxu0 0
        %656 = vmatpush1.bf16.msra.mxu0 0
        %657 = vmatprep.subr.bf16.mxu0 0
        %658 = vmatpush1.bf16.msra.mxu0 0
        %659 = vmatprep.subr.bf16.mxu0 0
        %660 = vmatpush1.bf16.msra.mxu0 0
        %661 = vmatprep.subr.bf16.mxu0 0
        %662 = vmatpush1.bf16.msra.mxu0 0
        %663 = vmatprep.subr.bf16.mxu0 0
        %664 = vmatpush1.bf16.msra.mxu0 0
        %665 = vmatprep.subr.bf16.mxu0 0
        %666 = vmatpush1.bf16.msra.mxu0 0
        %667 = vmatprep.subr.bf16.mxu0 0
        %668 = vmatpush1.bf16.msra.mxu0 0
        %669 = vmatprep.subr.bf16.mxu0 0
        %670 = vmatpush1.bf16.msra.mxu0 0
        %671 = vmatprep.subr.bf16.mxu0 0
        %672 = vmatpush1.bf16.msra.mxu0 0
        %673 = vmatprep.subr.bf16.mxu0 0
        %674 = vmatpush1.bf16.msra.mxu0 0
        %675 = vmatprep.subr.bf16.mxu0 0
        %676 = vmatpush1.bf16.msra.mxu0 0
        %677 = vmatprep.subr.bf16.mxu0 0
        %678 = vmatpush1.bf16.msra.mxu0 0
        %679 = vmatprep.subr.bf16.mxu0 0
        %680 = vmatpush1.bf16.msra.mxu0 0
        %681 = vmatprep.subr.bf16.mxu0 0
        %682 = vmatpush1.bf16.msra.mxu0 0
        %683 = vmatprep.subr.bf16.mxu0 0
        %684 = vmatpush1.bf16.msra.mxu0 0
        %685 = vmatprep.mubr.bf16.mxu0 0
        %686 = vmatmul.mubr.bf16.gmra.mrb[0].mxu0 %v649
        %v687 = vpop.f32.mrb[0].mxu0
        %v688 = vadd.f32 %v643, %v687
        %v689 = vpop.f32.mrb[0].mxu0
        %v690 = vpop.f32.mrb[0].mxu0
        %v691 = vpop.f32.mrb[0].mxu0
        %692 = vdwg.mxu0
        %s693 = scalar_lea.vmem %s4, 8
        %v694 = vld [vmem:[%s693] sm:$0xf]
        %695 = vrot.lane.b32.xlu0 %v595, 126
        %v696 = vpop.permute.xlu0 %695
        %v698 = vsel %vm300, %v694, 0
        %v701 = vsel %vm318, %v696, 0
        %703 = vmatprep.subr.bf16.mxu0 0
        %704 = vmatpush1.bf16.msra.mxu0 %v701
        %705 = vmatprep.subr.bf16.mxu0 0
        %706 = vmatpush1.bf16.msra.mxu0 0
        %707 = vmatprep.subr.bf16.mxu0 0
        %708 = vmatpush1.bf16.msra.mxu0 0
        %709 = vmatprep.subr.bf16.mxu0 0
        %710 = vmatpush1.bf16.msra.mxu0 0
        %711 = vmatprep.subr.bf16.mxu0 0
        %712 = vmatpush1.bf16.msra.mxu0 0
        %713 = vmatprep.subr.bf16.mxu0 0
        %714 = vmatpush1.bf16.msra.mxu0 0
        %715 = vmatprep.subr.bf16.mxu0 0
        %716 = vmatpush1.bf16.msra.mxu0 0
        %717 = vmatprep.subr.bf16.mxu0 0
        %718 = vmatpush1.bf16.msra.mxu0 0
        %719 = vmatprep.subr.bf16.mxu0 0
        %720 = vmatpush1.bf16.msra.mxu0 0
        %721 = vmatprep.subr.bf16.mxu0 0
        %722 = vmatpush1.bf16.msra.mxu0 0
        %723 = vmatprep.subr.bf16.mxu0 0
        %724 = vmatpush1.bf16.msra.mxu0 0
        %725 = vmatprep.subr.bf16.mxu0 0
        %726 = vmatpush1.bf16.msra.mxu0 0
        %727 = vmatprep.subr.bf16.mxu0 0
        %728 = vmatpush1.bf16.msra.mxu0 0
        %729 = vmatprep.subr.bf16.mxu0 0
        %730 = vmatpush1.bf16.msra.mxu0 0
        %731 = vmatprep.subr.bf16.mxu0 0
        %732 = vmatpush1.bf16.msra.mxu0 0
        %733 = vmatprep.subr.bf16.mxu0 0
        %734 = vmatpush1.bf16.msra.mxu0 0
        %735 = vmatprep.mubr.bf16.mxu0 0
        %736 = vmatmul.mubr.bf16.gmra.mrb[0].mxu0 %v698
        %v737 = vpop.f32.mrb[0].mxu0
        %v738 = vadd.f32 0.0, %v737
        %v739 = vpop.f32.mrb[0].mxu0
        %v740 = vpop.f32.mrb[0].mxu0
        %v741 = vpop.f32.mrb[0].mxu0
        %742 = vdwg.mxu0
        %v743 = vadd.f32 %v688, %v738
        %s744 = scalar_lea.vmem %s4, 12
        %v745 = vld [vmem:[%s744] sm:$0xf]
        %746 = vrot.lane.b32.xlu0 %v595, 125
        %v747 = vpop.permute.xlu0 %746
        %v749 = vsel %vm300, %v745, 0
        %v752 = vsel %vm318, %v747, 0
        %754 = vmatprep.subr.bf16.mxu0 0
        %755 = vmatpush1.bf16.msra.mxu0 %v752
        %756 = vmatprep.subr.bf16.mxu0 0
        %757 = vmatpush1.bf16.msra.mxu0 0
        %758 = vmatprep.subr.bf16.mxu0 0
        %759 = vmatpush1.bf16.msra.mxu0 0
        %760 = vmatprep.subr.bf16.mxu0 0
        %761 = vmatpush1.bf16.msra.mxu0 0
        %762 = vmatprep.subr.bf16.mxu0 0
        %763 = vmatpush1.bf16.msra.mxu0 0
        %764 = vmatprep.subr.bf16.mxu0 0
        %765 = vmatpush1.bf16.msra.mxu0 0
        %766 = vmatprep.subr.bf16.mxu0 0
        %767 = vmatpush1.bf16.msra.mxu0 0
        %768 = vmatprep.subr.bf16.mxu0 0
        %769 = vmatpush1.bf16.msra.mxu0 0
        %770 = vmatprep.subr.bf16.mxu0 0
        %771 = vmatpush1.bf16.msra.mxu0 0
        %772 = vmatprep.subr.bf16.mxu0 0
        %773 = vmatpush1.bf16.msra.mxu0 0
        %774 = vmatprep.subr.bf16.mxu0 0
        %775 = vmatpush1.bf16.msra.mxu0 0
        %776 = vmatprep.subr.bf16.mxu0 0
        %777 = vmatpush1.bf16.msra.mxu0 0
        %778 = vmatprep.subr.bf16.mxu0 0
        %779 = vmatpush1.bf16.msra.mxu0 0
        %780 = vmatprep.subr.bf16.mxu0 0
        %781 = vmatpush1.bf16.msra.mxu0 0
        %782 = vmatprep.subr.bf16.mxu0 0
        %783 = vmatpush1.bf16.msra.mxu0 0
        %784 = vmatprep.subr.bf16.mxu0 0
        %785 = vmatpush1.bf16.msra.mxu0 0
        %786 = vmatprep.mubr.bf16.mxu0 0
        %787 = vmatmul.mubr.bf16.gmra.mrb[0].mxu0 %v749
        %v788 = vpop.f32.mrb[0].mxu0
        %v789 = vadd.f32 0.0, %v788
        %v790 = vpop.f32.mrb[0].mxu0
        %v791 = vpop.f32.mrb[0].mxu0
        %v792 = vpop.f32.mrb[0].mxu0
        %793 = vdwg.mxu0
        %v794 = vadd.f32 %v743, %v789
        %s795 = scalar_lea.vmem %s4, 16
        %v796 = vld [vmem:[%s795] sm:$0xf]
        %797 = vrot.lane.b32.xlu0 %v595, 124
        %v798 = vpop.permute.xlu0 %797
        %v800 = vsel %vm300, %v796, 0
        %v803 = vsel %vm318, %v798, 0
        %805 = vmatprep.subr.bf16.mxu0 0
        %806 = vmatpush1.bf16.msra.mxu0 %v803
        %807 = vmatprep.subr.bf16.mxu0 0
        %808 = vmatpush1.bf16.msra.mxu0 0
        %809 = vmatprep.subr.bf16.mxu0 0
        %810 = vmatpush1.bf16.msra.mxu0 0
        %811 = vmatprep.subr.bf16.mxu0 0
        %812 = vmatpush1.bf16.msra.mxu0 0
        %813 = vmatprep.subr.bf16.mxu0 0
        %814 = vmatpush1.bf16.msra.mxu0 0
        %815 = vmatprep.subr.bf16.mxu0 0
        %816 = vmatpush1.bf16.msra.mxu0 0
        %817 = vmatprep.subr.bf16.mxu0 0
        %818 = vmatpush1.bf16.msra.mxu0 0
        %819 = vmatprep.subr.bf16.mxu0 0
        %820 = vmatpush1.bf16.msra.mxu0 0
        %821 = vmatprep.subr.bf16.mxu0 0
        %822 = vmatpush1.bf16.msra.mxu0 0
        %823 = vmatprep.subr.bf16.mxu0 0
        %824 = vmatpush1.bf16.msra.mxu0 0
        %825 = vmatprep.subr.bf16.mxu0 0
        %826 = vmatpush1.bf16.msra.mxu0 0
        %827 = vmatprep.subr.bf16.mxu0 0
        %828 = vmatpush1.bf16.msra.mxu0 0
        %829 = vmatprep.subr.bf16.mxu0 0
        %830 = vmatpush1.bf16.msra.mxu0 0
        %831 = vmatprep.subr.bf16.mxu0 0
        %832 = vmatpush1.bf16.msra.mxu0 0
        %833 = vmatprep.subr.bf16.mxu0 0
        %834 = vmatpush1.bf16.msra.mxu0 0
        %835 = vmatprep.subr.bf16.mxu0 0
        %836 = vmatpush1.bf16.msra.mxu0 0
        %837 = vmatprep.mubr.bf16.mxu0 0
        %838 = vmatmul.mubr.bf16.gmra.mrb[0].mxu0 %v800
        %v839 = vpop.f32.mrb[0].mxu0
        %v840 = vadd.f32 0.0, %v839
        %v841 = vpop.f32.mrb[0].mxu0
        %v842 = vpop.f32.mrb[0].mxu0
        %v843 = vpop.f32.mrb[0].mxu0
        %844 = vdwg.mxu0
        %v845 = vadd.f32 %v794, %v840
        %v846 = vld [vmem:[%s5] sm:$0xff]
        %848 = vset.pattern.permute.xlu0 0
        %849 = vperm.xlu0 %848, %v846
        %v850 = vpop.permute.xlu0 %849
        %v852 = vmul.f32 %v845, %v850
        %v853 = vld [vmem:[%s6] sm:$0xff]
        %855 = vset.pattern.permute.xlu0 0
        %856 = vperm.xlu0 %855, %v853
        %v857 = vpop.permute.xlu0 %856
        %v859 = vadd.f32 %v852, %v857
        %v860 = vmax.f32 %v859, 0.0
        %v861 = vpack.c.bf16 %v860, %v860
        %vm862 = vcmask 519168
        %863 = vst.msk [vmem:[%s267] sm:$0xf] %vm862, %v861
        %s864 = sand.u32 %s181, 1
        %s865 = scalar_lea.sflag [#allocation3], %s864
        %s866 = sand.u32 %s181, 1
        %s867 = smul.addr %s866, 4
        %s868 = scalar_lea.vmem [#allocation2], %s867
        // Predicated region
        $region49: #{tpu_custom_call.1} parent=47 // pred_check
          %p869 = pneg %p191
        $region50: #{tpu_custom_call.1} parent=47 // pred_check_branch
          %871 = sbr.rel (%p869) target = $region52
        $region51: #{tpu_custom_call.1} parent=47 // pred_region
          %s873 = ssub.s32 64, 64
          %874 = vsyncadd %s865, %s873
          %s875 = smul.addr %s21, 64
          %s876 = scalar_lea.hbm %s7, %s875
          %s878 = sshll.u32 %s868, 4
          %s879 = int_to_ptr.vmem [resolvable:$true] %s878
          %881 = dma.vmem_to_hbm [thread:$0]  %s879, 64, %s876, %s865
        $region52: #{tpu_custom_call.1} parent=47 // pred_fallthru
          _
      $region48: #{tpu_custom_call.1} parent=5 // pred_fallthru
        _
      %p882 = scmp.le.s32.totalorder 2, %s16
      // Predicated region
      $region53: #{tpu_custom_call.1} parent=5 // pred_check
        %p883 = pneg %p882
      $region54: #{tpu_custom_call.1} parent=5 // pred_check_branch
        %885 = sbr.rel (%p883) target = $region56
      $region55: #{tpu_custom_call.1} parent=5 // pred_region
        %s886 = ssub.s32 %s16, 2
        // Predicated region
        $region57: #{tpu_custom_call.1} parent=55 // pred_check
          %p887 = pneg %p197
        $region58: #{tpu_custom_call.1} parent=55 // pred_check_branch
          %889 = sbr.rel (%p887) target = $region60
        $region59: #{tpu_custom_call.1} parent=55 // pred_region
          %s890 = sand.u32 %s182, 1
          %s891 = scalar_lea.sflag [#allocation3], %s890
          %s892 = sand.u32 %s182, 1
          %s893 = smul.addr %s892, 4
          %s894 = scalar_lea.vmem [#allocation2], %s893
          %895 = dma.done %s891, 64
        $region60: #{tpu_custom_call.1} parent=55 // pred_fallthru
          _
      $region56: #{tpu_custom_call.1} parent=5 // pred_fallthru
        _
    $region6: #{tpu_custom_call.1} parent=1 // loop_footer
      %s20 = sadd.s32 1, %s16
    $region7: #{tpu_custom_call.1} parent=1 // loop_footer_branch
      %15 = sbr.rel target = $region3
    $region8: #{tpu_custom_call.1} parent=1 // loop_exit
      _
    %896 = vsyncpa [#allocation3], 1
    %s897 = scalar_lea.sflag [#allocation3], 1
    %898 = vsyncpa %s897, 1

</llo_original>
